<compile_context>
chip_gen: v7x
topology: tpu7x:2x2x1
jax: 0.10.0
libtpu: 0.0.40
codegen_flags: <defaults>
</compile_context>

<pallas_src>
import functools

import jax
import jax.numpy as jnp
from jax.experimental import pallas as pl
from jax.experimental.pallas import tpu as pltpu

LANE = 128
SUBLANE = 8


def _round_up(x, m):
    return ((x + m - 1) // m) * m


# ------------------------------ Pallas kernels ------------------------------

def _mm_single_step_kernel(a_ref, b_ref, bias_ref, o_ref, *, relu):
    """Whole K in one tile: matmul + bias [+relu] in one shot (no scratch)."""
    out = jnp.dot(a_ref[...], b_ref[...], preferred_element_type=jnp.float32)
    out = out + bias_ref[...]
    if relu:
        out = jnp.maximum(out, 0.0)
    o_ref[...] = out.astype(o_ref.dtype)


def _mm_single_step_res_kernel(a_ref, b_ref, bias_ref, res_ref, o_ref, *, relu):
    """Single K step plus an f32 residual add in the epilogue."""
    out = jnp.dot(a_ref[...], b_ref[...], preferred_element_type=jnp.float32)
    out = out + bias_ref[...] + res_ref[...]
    if relu:
        out = jnp.maximum(out, 0.0)
    o_ref[...] = out.astype(o_ref.dtype)


def _mm_kloop_kernel(a_ref, b_ref, bias_ref, o_ref, acc_ref, *, relu):
    """Tiled matmul over a K grid axis; epilogue only at the last K step."""
    @pl.when(pl.program_id(2) == 0)
    def _init():
        acc_ref[...] = jnp.zeros_like(acc_ref)

    acc_ref[...] += jnp.dot(a_ref[...], b_ref[...],
                            preferred_element_type=jnp.float32)

    @pl.when(pl.program_id(2) == pl.num_programs(2) - 1)
    def _finalize():
        out = acc_ref[...] + bias_ref[...]
        if relu:
            out = jnp.maximum(out, 0.0)
        o_ref[...] = out.astype(o_ref.dtype)


def _mm_kloop_res_kernel(a_ref, b_ref, bias_ref, res_ref, o_ref, acc_ref, *, relu):
    """Same as above plus an f32 residual add in the epilogue."""
    @pl.when(pl.program_id(2) == 0)
    def _init():
        acc_ref[...] = jnp.zeros_like(acc_ref)

    acc_ref[...] += jnp.dot(a_ref[...], b_ref[...],
                            preferred_element_type=jnp.float32)

    @pl.when(pl.program_id(2) == pl.num_programs(2) - 1)
    def _finalize():
        out = acc_ref[...] + bias_ref[...] + res_ref[...]
        if relu:
            out = jnp.maximum(out, 0.0)
        o_ref[...] = out.astype(o_ref.dtype)


def _pick_tiles(M, Kp, Cp):
    if M >= 512:
        tm = 512
    elif M >= 256:
        tm = 256
    else:
        tm = _round_up(M, SUBLANE)
    Mp = _round_up(M, tm)
    tn = 256 if (Cp >= 256 and Cp % 256 == 0) else LANE
    if Kp <= 1024:
        tk = Kp            # single K step -> fast-path kernel
    elif Kp % 512 == 0:
        tk = 512
    elif Kp % 256 == 0:
        tk = 256
    else:
        tk = LANE
    return tm, Mp, tn, tk


def fused_conv_matmul(a, b, bias, residual=None, *, relu, out_dtype=jnp.float32):
    """(M,K) @ (K,Cout) with fused per-channel bias, optional residual, optional ReLU.

    Operands are cast to bf16 for the MXU (f32 accumulation); bias/residual and
    the epilogue stay in f32.  Inputs are zero-padded to lane/sublane friendly
    shapes; the padding is sliced off the result.
    """
    M, K = a.shape
    K2, c_out = b.shape
    assert K == K2, (K, K2)

    Kp = _round_up(K, LANE)
    Cp = _round_up(c_out, LANE)
    tm, Mp, tn, tk = _pick_tiles(M, Kp, Cp)

    def pad2(arr, r, c, dtype):
        arr = arr.astype(dtype)
        if r or c:
            arr = jnp.pad(arr, ((0, r), (0, c)))
        return arr

    a_p = pad2(a, Mp - M, Kp - K, jnp.bfloat16)
    b_p = pad2(b, Kp - K, Cp - c_out, jnp.bfloat16)
    bias_p = pad2(bias.reshape(1, -1), 0, Cp - c_out, jnp.float32)

    single_step = (Kp == tk)

    if single_step:
        grid = (Mp // tm, Cp // tn)
        in_specs = [
            pl.BlockSpec((tm, tk), lambda i, j: (i, 0)),
            pl.BlockSpec((tk, tn), lambda i, j: (0, j)),
            pl.BlockSpec((1, tn), lambda i, j: (0, j)),
        ]
        out_specs = pl.BlockSpec((tm, tn), lambda i, j: (i, j))
        res_spec = pl.BlockSpec((tm, tn), lambda i, j: (i, j))
        scratch = []
        dims = ("parallel", "parallel")
        kernel = (_mm_single_step_res_kernel if residual is not None
                  else _mm_single_step_kernel)
    else:
        grid = (Mp // tm, Cp // tn, Kp // tk)
        in_specs = [
            pl.BlockSpec((tm, tk), lambda i, j, k: (i, k)),
            pl.BlockSpec((tk, tn), lambda i, j, k: (k, j)),
            pl.BlockSpec((1, tn), lambda i, j, k: (0, j)),
        ]
        out_specs = pl.BlockSpec((tm, tn), lambda i, j, k: (i, j))
        res_spec = pl.BlockSpec((tm, tn), lambda i, j, k: (i, j))
        scratch = [pltpu.VMEM((tm, tn), jnp.float32)]
        dims = ("parallel", "parallel", "arbitrary")
        kernel = (_mm_kloop_res_kernel if residual is not None
                  else _mm_kloop_kernel)

    operands = [a_p, b_p, bias_p]
    if residual is not None:
        operands.append(pad2(residual, Mp - M, Cp - c_out, jnp.float32))
        in_specs.append(res_spec)

    out = pl.pallas_call(
        functools.partial(kernel, relu=relu),
        out_shape=jax.ShapeDtypeStruct((Mp, Cp), out_dtype),
        grid_spec=pltpu.PrefetchScalarGridSpec(
            num_scalar_prefetch=0,
            grid=grid,
            in_specs=in_specs,
            out_specs=out_specs,
            scratch_shapes=scratch,
        ),
        compiler_params=pltpu.CompilerParams(
            dimension_semantics=dims,
            vmem_limit_bytes=32 * 1024 * 1024,
        ),
    )(*operands)
    return out[:M, :c_out]


# ------------------------------ JAX glue -----------------------------------

def _im2col_3x3(x_nhwc, stride):
    """pad=1, kernel=3x3 im2col. Returns (N*Ho*Wo, 9*C), Ho, Wo. Keeps dtype."""
    N, H, W, C = x_nhwc.shape
    xp = jnp.pad(x_nhwc, ((0, 0), (1, 1), (1, 1), (0, 0)))
    Ho = (H + 2 - 3) // stride + 1
    Wo = (W + 2 - 3) // stride + 1
    cols = []
    for ky in range(3):
        for kx in range(3):
            patch = jax.lax.slice(
                xp,
                (0, ky, kx, 0),
                (N, ky + (Ho - 1) * stride + 1, kx + (Wo - 1) * stride + 1, C),
                (1, stride, stride, 1),
            )
            cols.append(patch)
    patches = jnp.concatenate(cols, axis=-1)  # (N, Ho, Wo, 9*C), order = (ky, kx, cin)
    return patches.reshape(N * Ho * Wo, 9 * C), Ho, Wo


def _fold_bn(gamma, beta, mean, var, eps=1e-5):
    """Eval-mode BN folded into a per-channel scale (goes into weights) + bias."""
    scale = gamma.astype(jnp.float32) / jnp.sqrt(var.astype(jnp.float32) + eps)
    bias = beta.astype(jnp.float32) - mean.astype(jnp.float32) * scale
    return scale, bias


def _conv3x3_w_to_matmul(w_oihw):
    """PyTorch (Cout, Cin, 3, 3) -> (9*Cin, Cout) matching im2col (ky, kx, cin)."""
    c_out = w_oihw.shape[0]
    return jnp.transpose(w_oihw, (2, 3, 1, 0)).reshape(-1, c_out).astype(jnp.float32)


def basic_block_forward(x_nchw, params, stride):
    N, c_in, H, W = x_nchw.shape
    x = jnp.transpose(x_nchw, (0, 2, 3, 1)).astype(jnp.float32)  # NHWC

    # ---- conv1 (3x3, stride) + bn1 + relu : one tiled Pallas matmul ----
    w1 = _conv3x3_w_to_matmul(params["conv1_w"])                 # (9*Cin, planes)
    planes = w1.shape[1]
    s1, b1 = _fold_bn(params["bn1_gamma"], params["bn1_beta"],
                      params["bn1_mean"], params["bn1_var"])
    p1, H1, W1 = _im2col_3x3(x.astype(jnp.bfloat16), stride)     # bf16 patches
    out1 = fused_conv_matmul(p1, w1 * s1[None, :], b1,
                             relu=True, out_dtype=jnp.bfloat16)  # (M, planes)
    out1_nhwc = out1.reshape(N, H1, W1, planes)
    M = N * H1 * W1

    # ---- conv2 (3x3, s=1) + bn2 [+ shortcut] + add + relu : one fused matmul ----
    w2 = _conv3x3_w_to_matmul(params["conv2_w"])
    s2, b2 = _fold_bn(params["bn2_gamma"], params["bn2_beta"],
                      params["bn2_mean"], params["bn2_var"])
    p2, _, _ = _im2col_3x3(out1_nhwc, 1)                         # bf16 patches

    a2 = p2
    b2m = w2 * s2[None, :]
    bias2 = b2
    residual = None
    if stride != 1 or c_in != planes:
        # 1x1-conv + BN shortcut fused into the same matmul: extra K columns.
        xs = x[:, ::stride, ::stride, :].reshape(M, c_in)
        wsc = jnp.transpose(params["conv_sc_w"], (2, 3, 1, 0)).reshape(c_in, planes)
        ssc, bsc = _fold_bn(params["bn_sc_gamma"], params["bn_sc_beta"],
                            params["bn_sc_mean"], params["bn_sc_var"])
        a2 = jnp.concatenate([p2, xs.astype(jnp.bfloat16)], axis=1)
        b2m = jnp.concatenate([b2m, wsc.astype(jnp.float32) * ssc[None, :]], axis=0)
        bias2 = b2 + bsc
    else:
        # Identity shortcut: added in f32 inside the kernel epilogue.
        residual = x.reshape(M, planes)

    out2 = fused_conv_matmul(a2, b2m, bias2, residual=residual,
                             relu=True, out_dtype=jnp.float32)   # (M, planes)
    out = out2.reshape(N, H1, W1, planes)
    return jnp.transpose(out, (0, 3, 1, 2))                      # back to NCHW


# ------------------------------ pure-JAX reference ---------------------------

def _ref_basic_block(x_nchw, params, stride, eps=1e-5):
    def conv(x, w, s, pad):
        return jax.lax.conv_general_dilated(
            x, w, window_strides=(s, s), padding=[(pad, pad), (pad, pad)],
            dimension_numbers=("NCHW", "OIHW", "NCHW"))

    def bn(x, g, b, m, v):
        g, b, m, v = (t.reshape(1, -1, 1, 1) for t in (g, b, m, v))
        return (x - m) / jnp.sqrt(v + eps) * g + b

    out = jax.nn.relu(bn(conv(x_nchw, params["conv1_w"], stride, 1),
                         params["bn1_gamma"], params["bn1_beta"],
                         params["bn1_mean"], params["bn1_var"]))
    out = bn(conv(out, params["conv2_w"], 1, 1),
             params["bn2_gamma"], params["bn2_beta"],
             params["bn2_mean"], params["bn2_var"])
    in_planes, planes = x_nchw.shape[1], params["conv1_w"].shape[0]
    if stride != 1 or in_planes != planes:
        sc = bn(conv(x_nchw, params["conv_sc_w"], stride, 0),
                params["bn_sc_gamma"], params["bn_sc_beta"],
                params["bn_sc_mean"], params["bn_sc_var"])
    else:
        sc = x_nchw
    return jax.nn.relu(out + sc)


# ------------------------------ parameter init ------------------------------

def init_basic_block_params(key, in_planes, planes):
    ks = jax.random.split(key, 16)
    f32 = jnp.float32

    def bn(kg, kb, km, kv, c):
        return (1.0 + 0.1 * jax.random.normal(kg, (c,), f32),
                0.1 * jax.random.normal(kb, (c,), f32),
                0.1 * jax.random.normal(km, (c,), f32),
                1.0 + 0.1 * jnp.abs(jax.random.normal(kv, (c,), f32)))

    g1, b1, m1, v1 = bn(ks[1], ks[2], ks[3], ks[4], planes)
    g2, b2, m2, v2 = bn(ks[6], ks[7], ks[8], ks[9], planes)
    gs, bs, ms, vs = bn(ks[11], ks[12], ks[13], ks[14], planes)

    return {
        "conv1_w": 0.1 * jax.random.normal(ks[0], (planes, in_planes, 3, 3), f32),
        "bn1_gamma": g1, "bn1_beta": b1, "bn1_mean": m1, "bn1_var": v1,
        "conv2_w": 0.1 * jax.random.normal(ks[5], (planes, planes, 3, 3), f32),
        "bn2_gamma": g2, "bn2_beta": b2, "bn2_mean": m2, "bn2_var": v2,
        "conv_sc_w": 0.1 * jax.random.normal(ks[10], (planes, in_planes, 1, 1), f32),
        "bn_sc_gamma": gs, "bn_sc_beta": bs, "bn_sc_mean": ms, "bn_sc_var": vs,
    }


# ------------------------------ main ----------------------------------------

if __name__ == "__main__":
    forward = jax.jit(basic_block_forward, static_argnums=(2,))
    root = jax.random.PRNGKey(0)

    # (in_planes, planes, stride, H):
    #   stride=2 exercises the fused 1x1 shortcut,
    #   stride=1 with matching channels exercises the identity-residual path,
    #   the wide config (K = 9*128 > 1024) exercises the K-loop accumulator path.
    configs = [(4, 8, 2, 16), (8, 8, 1, 16), (128, 128, 1, 8)]
    N = 2

    for idx, (in_planes, planes, stride, H) in enumerate(configs):
        W = H
        k_x, k_p = jax.random.split(jax.random.fold_in(root, idx))
        x = jax.random.normal(k_x, (N, in_planes, H, W), jnp.float32)  # NCHW
        params = init_basic_block_params(k_p, in_planes, planes)

        out = forward(x, params, stride)
        out = jax.block_until_ready(out)

        Ho = (H + 2 - 3) // stride + 1
        expected_shape = (N, planes, Ho, Ho)
        assert out.shape == expected_shape, (out.shape, expected_shape)
        assert bool(jnp.all(out >= 0.0)), "final ReLU violated"

        # Correctness vs pure-JAX f32 reference (bf16 MXU operands -> ~1e-2 dev).
        ref = _ref_basic_block(x, params, stride)
        err = float(jnp.max(jnp.abs(out.astype(jnp.float32) - ref)))
        scale = float(jnp.max(jnp.abs(ref))) + 1e-6
        assert err / scale < 1e-1, f"mismatch: max abs err {err} vs scale {scale}"

    print("KERNEL_OK")
</pallas_src>

<mosaic_0001>
module attributes {stable_mosaic.version = 11 : i64} {
  func.func @_mm_single_step_kernel(%arg0: i32, %arg1: i32, %arg2: memref<128x128xbf16, #tpu.memory_space<vmem>>, %arg3: memref<128x128xbf16, #tpu.memory_space<vmem>>, %arg4: memref<1x128xf32, #tpu.memory_space<vmem>>, %arg5: memref<128x128xbf16, #tpu.memory_space<vmem>>) attributes {dimension_semantics = [#tpu.dimension_semantics<parallel>, #tpu.dimension_semantics<parallel>], iteration_bounds = array<i64: 1, 1>, scalar_prefetch = 0 : i64, scratch_operands = 0 : i64, tpu.core_type = #tpu.core_type<tc>, window_params = [{transform_indices = @transform_0, window_bounds = array<i64: 128, 128>}, {transform_indices = @transform_1, window_bounds = array<i64: 128, 128>}, {transform_indices = @transform_2, window_bounds = array<i64: 1, 128>}, {transform_indices = @transform_3, window_bounds = array<i64: 128, 128>}]} {
    %c0 = arith.constant 0 : index
    %c0_0 = arith.constant 0 : index
    %0 = vector.load %arg2[%c0, %c0_0] : memref<128x128xbf16, #tpu.memory_space<vmem>>, vector<128x128xbf16>
    %c0_1 = arith.constant 0 : index
    %c0_2 = arith.constant 0 : index
    %1 = vector.load %arg3[%c0_1, %c0_2] : memref<128x128xbf16, #tpu.memory_space<vmem>>, vector<128x128xbf16>
    %cst = arith.constant dense<0.000000e+00> : vector<128x128xf32>
    %2 = tpu.matmul %0, %1, %cst {dimension_numbers = #tpu.dot_dimension_numbers<[1], [0], [0], [1], [0, 0, 1, 1], [], []>} : vector<128x128xbf16>, vector<128x128xbf16>, vector<128x128xf32> -> vector<128x128xf32>
    %c0_3 = arith.constant 0 : index
    %c0_4 = arith.constant 0 : index
    %3 = vector.load %arg4[%c0_3, %c0_4] : memref<1x128xf32, #tpu.memory_space<vmem>>, vector<1x128xf32>
    %4 = vector.broadcast %3 : vector<1x128xf32> to vector<128x128xf32>
    %5 = arith.addf %2, %4 : vector<128x128xf32>
    %cst_5 = arith.constant 0.000000e+00 : f32
    %6 = vector.broadcast %cst_5 : f32 to vector<128x128xf32>
    %7 = arith.maximumf %5, %6 : vector<128x128xf32>
    %8 = arith.truncf %7 : vector<128x128xf32> to vector<128x128xbf16>
    %c0_6 = arith.constant 0 : index
    %c0_7 = arith.constant 0 : index
    %9 = vector.load %arg5[%c0_6, %c0_7] : memref<128x128xbf16, #tpu.memory_space<vmem>>, vector<128x128xbf16>
    tpu.vector_store %arg5[%c0_6, %c0_7], %8 {strides = array<i32>} : memref<128x128xbf16, #tpu.memory_space<vmem>>, vector<128x128xbf16>,
    return
  }
  func.func @transform_0(%arg0: i32, %arg1: i32) -> (i32, i32) {
    %c0_i32 = arith.constant 0 : i32
    %c0_i32_0 = arith.constant 0 : i32
    return %arg0, %c0_i32 : i32, i32
  }
  func.func @transform_1(%arg0: i32, %arg1: i32) -> (i32, i32) {
    %c0_i32 = arith.constant 0 : i32
    %c0_i32_0 = arith.constant 0 : i32
    return %c0_i32, %arg1 : i32, i32
  }
  func.func @transform_2(%arg0: i32, %arg1: i32) -> (i32, i32) {
    %c0_i32 = arith.constant 0 : i32
    %c0_i32_0 = arith.constant 0 : i32
    return %c0_i32, %arg1 : i32, i32
  }
  func.func @transform_3(%arg0: i32, %arg1: i32) -> (i32, i32) {
    %c0_i32 = arith.constant 0 : i32
    return %arg0, %arg1 : i32, i32
  }
}

module attributes {stable_mosaic.version = 11 : i64} {
  func.func @_mm_single_step_kernel(%arg0: i32, %arg1: i32, %arg2: memref<128x128xbf16, #tpu.memory_space<vmem>>, %arg3: memref<128x128xbf16, #tpu.memory_space<vmem>>, %arg4: memref<1x128xf32, #tpu.memory_space<vmem>>, %arg5: memref<128x128xf32, #tpu.memory_space<vmem>>) attributes {dimension_semantics = [#tpu.dimension_semantics<parallel>, #tpu.dimension_semantics<parallel>], iteration_bounds = array<i64: 1, 1>, scalar_prefetch = 0 : i64, scratch_operands = 0 : i64, tpu.core_type = #tpu.core_type<tc>, window_params = [{transform_indices = @transform_0, window_bounds = array<i64: 128, 128>}, {transform_indices = @transform_1, window_bounds = array<i64: 128, 128>}, {transform_indices = @transform_2, window_bounds = array<i64: 1, 128>}, {transform_indices = @transform_3, window_bounds = array<i64: 128, 128>}]} {
    %c0 = arith.constant 0 : index
    %c0_0 = arith.constant 0 : index
    %0 = vector.load %arg2[%c0, %c0_0] : memref<128x128xbf16, #tpu.memory_space<vmem>>, vector<128x128xbf16>
    %c0_1 = arith.constant 0 : index
    %c0_2 = arith.constant 0 : index
    %1 = vector.load %arg3[%c0_1, %c0_2] : memref<128x128xbf16, #tpu.memory_space<vmem>>, vector<128x128xbf16>
    %cst = arith.constant dense<0.000000e+00> : vector<128x128xf32>
    %2 = tpu.matmul %0, %1, %cst {dimension_numbers = #tpu.dot_dimension_numbers<[1], [0], [0], [1], [0, 0, 1, 1], [], []>} : vector<128x128xbf16>, vector<128x128xbf16>, vector<128x128xf32> -> vector<128x128xf32>
    %c0_3 = arith.constant 0 : index
    %c0_4 = arith.constant 0 : index
    %3 = vector.load %arg4[%c0_3, %c0_4] : memref<1x128xf32, #tpu.memory_space<vmem>>, vector<1x128xf32>
    %4 = vector.broadcast %3 : vector<1x128xf32> to vector<128x128xf32>
    %5 = arith.addf %2, %4 : vector<128x128xf32>
    %cst_5 = arith.constant 0.000000e+00 : f32
    %6 = vector.broadcast %cst_5 : f32 to vector<128x128xf32>
    %7 = arith.maximumf %5, %6 : vector<128x128xf32>
    %c0_6 = arith.constant 0 : index
    %c0_7 = arith.constant 0 : index
    %8 = vector.load %arg5[%c0_6, %c0_7] : memref<128x128xf32, #tpu.memory_space<vmem>>, vector<128x128xf32>
    tpu.vector_store %arg5[%c0_6, %c0_7], %7 {strides = array<i32>} : memref<128x128xf32, #tpu.memory_space<vmem>>, vector<128x128xf32>,
    return
  }
  func.func @transform_0(%arg0: i32, %arg1: i32) -> (i32, i32) {
    %c0_i32 = arith.constant 0 : i32
    %c0_i32_0 = arith.constant 0 : i32
    return %arg0, %c0_i32 : i32, i32
  }
  func.func @transform_1(%arg0: i32, %arg1: i32) -> (i32, i32) {
    %c0_i32 = arith.constant 0 : i32
    %c0_i32_0 = arith.constant 0 : i32
    return %c0_i32, %arg1 : i32, i32
  }
  func.func @transform_2(%arg0: i32, %arg1: i32) -> (i32, i32) {
    %c0_i32 = arith.constant 0 : i32
    %c0_i32_0 = arith.constant 0 : i32
    return %c0_i32, %arg1 : i32, i32
  }
  func.func @transform_3(%arg0: i32, %arg1: i32) -> (i32, i32) {
    %c0_i32 = arith.constant 0 : i32
    return %arg0, %arg1 : i32, i32
  }
}

</mosaic_0001>

<llo_original>
// kernel: basic_block_forward.2
$region0: #{basic_block_forward.2}
  #allocation0 [shape = 'u32[]', space=smem, size = 0x4, offset = 0x4, fixed_abs, tag = 'smem constant byte address 0x4 - core index']
  #allocation1 [shape = 'u32[144,128]{1,0:T(1,128)}', space=vmem, size = 0x12000, scoped, tag = 'internal scratch']
  %s0 = inlined_call_operand.vmem [shape: bf16[128,128], index: 0, kind: input, shape index: {}]
  %s1 = inlined_call_operand.vmem [shape: bf16[128,128], index: 1, kind: input, shape index: {}]
  %s2 = inlined_call_operand.vmem [shape: f32[1,128], index: 2, kind: input, shape index: {}]
  %s3 = inlined_call_operand.vmem [shape: bf16[128,128], index: 3, kind: output, shape index: {}]
  %s4 = sld [smem:[#allocation0]]
  $region22: #{basic_block_forward.2} parent=0
    _
  %s6 = ssub.s32 1, %s4
  %s7 = scalar_select 0, %s6, %s4
  // Predicated region
  $region2: #{basic_block_forward.2} parent=0 // pred_check
    _
  $region3: #{basic_block_forward.2} parent=0 // pred_check_branch
    %9 = sbr.rel (0) target = $region5
  $region4: #{basic_block_forward.2} parent=0 // pred_region
    _
  $region5: #{basic_block_forward.2} parent=0 // pred_fallthru
    _
  // Predicated region
  $region6: #{basic_block_forward.2} parent=0 // pred_check
    _
  $region7: #{basic_block_forward.2} parent=0 // pred_check_branch
    %11 = sbr.rel (0) target = $region9
  $region8: #{basic_block_forward.2} parent=0 // pred_region
    _
  $region9: #{basic_block_forward.2} parent=0 // pred_fallthru
    _
  // Predicated region
  $region10: #{basic_block_forward.2} parent=0 // pred_check
    _
  $region11: #{basic_block_forward.2} parent=0 // pred_check_branch
    %13 = sbr.rel (0) target = $region13
  $region12: #{basic_block_forward.2} parent=0 // pred_region
    _
  $region13: #{basic_block_forward.2} parent=0 // pred_fallthru
    _
  %v15 = vld [vmem:[%s0] sm:$0xf]
  %v16 = vld [vmem:[%s0 + $0x4] sm:$0xf]
  %v17 = vld [vmem:[%s0 + $0x8] sm:$0xf]
  %v18 = vld [vmem:[%s0 + $0xc] sm:$0xf]
  %v19 = vld [vmem:[%s0 + $0x10] sm:$0xf]
  %v20 = vld [vmem:[%s0 + $0x14] sm:$0xf]
  %v21 = vld [vmem:[%s0 + $0x18] sm:$0xf]
  %v22 = vld [vmem:[%s0 + $0x1c] sm:$0xf]
  %v23 = vld [vmem:[%s0 + $0x20] sm:$0xf]
  %v24 = vld [vmem:[%s0 + $0x24] sm:$0xf]
  %v25 = vld [vmem:[%s0 + $0x28] sm:$0xf]
  %v26 = vld [vmem:[%s0 + $0x2c] sm:$0xf]
  %v27 = vld [vmem:[%s0 + $0x30] sm:$0xf]
  %v28 = vld [vmem:[%s0 + $0x34] sm:$0xf]
  %v29 = vld [vmem:[%s0 + $0x38] sm:$0xf]
  %v30 = vld [vmem:[%s0 + $0x3c] sm:$0xf]
  %v31 = vld [vmem:[%s1] sm:$0xf]
  %v32 = vld [vmem:[%s1 + $0x4] sm:$0xf]
  %v33 = vld [vmem:[%s1 + $0x8] sm:$0xf]
  %v34 = vld [vmem:[%s1 + $0xc] sm:$0xf]
  %v35 = vld [vmem:[%s1 + $0x10] sm:$0xf]
  %v36 = vld [vmem:[%s1 + $0x14] sm:$0xf]
  %v37 = vld [vmem:[%s1 + $0x18] sm:$0xf]
  %v38 = vld [vmem:[%s1 + $0x1c] sm:$0xf]
  %v39 = vld [vmem:[%s1 + $0x20] sm:$0xf]
  %v40 = vld [vmem:[%s1 + $0x24] sm:$0xf]
  %v41 = vld [vmem:[%s1 + $0x28] sm:$0xf]
  %v42 = vld [vmem:[%s1 + $0x2c] sm:$0xf]
  %v43 = vld [vmem:[%s1 + $0x30] sm:$0xf]
  %v44 = vld [vmem:[%s1 + $0x34] sm:$0xf]
  %v45 = vld [vmem:[%s1 + $0x38] sm:$0xf]
  %v46 = vld [vmem:[%s1 + $0x3c] sm:$0xf]
  %v47 = vld [vmem:[%s2] sm:$0x1]
  %v49 = vlaneseq
  %v50 = vshrl.u32 %v49, 7
  %v51 = vsub.s32 0, %v50
  %v52 = vrot.slane %v47, %v51
  %v70 = vunpack.c.l.b16 %v15
  %v71 = vunpack.c.l.b16 %v16
  %v72 = vunpack.c.l.b16 %v17
  %v73 = vunpack.c.l.b16 %v18
  %v74 = vunpack.c.l.b16 %v19
  %v75 = vunpack.c.l.b16 %v20
  %v76 = vunpack.c.l.b16 %v21
  %v77 = vunpack.c.l.b16 %v22
  %v78 = vunpack.c.l.b16 %v23
  %v79 = vunpack.c.l.b16 %v24
  %v80 = vunpack.c.l.b16 %v25
  %v81 = vunpack.c.l.b16 %v26
  %v82 = vunpack.c.l.b16 %v27
  %v83 = vunpack.c.l.b16 %v28
  %v84 = vunpack.c.l.b16 %v29
  %v85 = vunpack.c.l.b16 %v30
  %v86 = vpack.c.b16 %v71, %v70
  %v87 = vpack.c.b16 %v73, %v72
  %v88 = vpack.c.b16 %v75, %v74
  %v89 = vpack.c.b16 %v77, %v76
  %v90 = vpack.c.b16 %v79, %v78
  %v91 = vpack.c.b16 %v81, %v80
  %v92 = vpack.c.b16 %v83, %v82
  %v93 = vpack.c.b16 %v85, %v84
  %v118 = vunpack.c.l.b16 %v31
  %v119 = vunpack.c.l.b16 %v32
  %v120 = vunpack.c.l.b16 %v33
  %v121 = vunpack.c.l.b16 %v34
  %v122 = vunpack.c.l.b16 %v35
  %v123 = vunpack.c.l.b16 %v36
  %v124 = vunpack.c.l.b16 %v37
  %v125 = vunpack.c.l.b16 %v38
  %v126 = vunpack.c.l.b16 %v39
  %v127 = vunpack.c.l.b16 %v40
  %v128 = vunpack.c.l.b16 %v41
  %v129 = vunpack.c.l.b16 %v42
  %v130 = vunpack.c.l.b16 %v43
  %v131 = vunpack.c.l.b16 %v44
  %v132 = vunpack.c.l.b16 %v45
  %v133 = vunpack.c.l.b16 %v46
  %v134 = vpack.c.b16 %v119, %v118
  %v135 = vpack.c.b16 %v121, %v120
  %v136 = vpack.c.b16 %v123, %v122
  %v137 = vpack.c.b16 %v125, %v124
  %v138 = vpack.c.b16 %v127, %v126
  %v139 = vpack.c.b16 %v129, %v128
  %v140 = vpack.c.b16 %v131, %v130
  %v141 = vpack.c.b16 %v133, %v132
  %150 = vmatprep.subr.bf16.mxu0 0
  %151 = vmatpush1.bf16.msra.mxu0 %v134
  %152 = vmatprep.subr.bf16.mxu0 0
  %153 = vmatpush1.bf16.msra.mxu0 %v135
  %154 = vmatprep.subr.bf16.mxu0 0
  %155 = vmatpush1.bf16.msra.mxu0 %v136
  %156 = vmatprep.subr.bf16.mxu0 0
  %157 = vmatpush1.bf16.msra.mxu0 %v137
  %158 = vmatprep.subr.bf16.mxu0 0
  %159 = vmatpush1.bf16.msra.mxu0 %v138
  %160 = vmatprep.subr.bf16.mxu0 0
  %161 = vmatpush1.bf16.msra.mxu0 %v139
  %162 = vmatprep.subr.bf16.mxu0 0
  %163 = vmatpush1.bf16.msra.mxu0 %v140
  %164 = vmatprep.subr.bf16.mxu0 0
  %165 = vmatpush1.bf16.msra.mxu0 %v141
  %166 = vmatprep.subr.bf16.mxu0 0
  %167 = vmatpush1.bf16.msra.mxu0 0
  %168 = vmatprep.subr.bf16.mxu0 0
  %169 = vmatpush1.bf16.msra.mxu0 0
  %170 = vmatprep.subr.bf16.mxu0 0
  %171 = vmatpush1.bf16.msra.mxu0 0
  %172 = vmatprep.subr.bf16.mxu0 0
  %173 = vmatpush1.bf16.msra.mxu0 0
  %174 = vmatprep.subr.bf16.mxu0 0
  %175 = vmatpush1.bf16.msra.mxu0 0
  %176 = vmatprep.subr.bf16.mxu0 0
  %177 = vmatpush1.bf16.msra.mxu0 0
  %178 = vmatprep.subr.bf16.mxu0 0
  %179 = vmatpush1.bf16.msra.mxu0 0
  %180 = vmatprep.subr.bf16.mxu0 0
  %181 = vmatpush1.bf16.msra.mxu0 0
  %182 = vmatprep.mubr.bf16.mxu0 0
  %183 = vmatmul.mubr.bf16.gmra.mrb[0].mxu0 %v86
  %v184 = vpop.f32.mrb[0].mxu0
  %v185 = vadd.f32 %v52, %v184
  %v186 = vpop.f32.mrb[0].mxu0
  %v187 = vpop.f32.mrb[0].mxu0
  %v188 = vadd.f32 %v52, %v187
  %v189 = vpop.f32.mrb[0].mxu0
  %190 = vmatprep.mubr.bf16.mxu0 0
  %191 = vmatmul.mubr.bf16.gmra.mrb[0].mxu0 %v87
  %v192 = vpop.f32.mrb[0].mxu0
  %v193 = vadd.f32 %v52, %v192
  %v194 = vpop.f32.mrb[0].mxu0
  %v195 = vpop.f32.mrb[0].mxu0
  %v196 = vadd.f32 %v52, %v195
  %v197 = vpop.f32.mrb[0].mxu0
  %198 = vmatprep.mubr.bf16.mxu0 0
  %199 = vmatmul.mubr.bf16.gmra.mrb[0].mxu0 %v88
  %v200 = vpop.f32.mrb[0].mxu0
  %v201 = vadd.f32 %v52, %v200
  %v202 = vpop.f32.mrb[0].mxu0
  %v203 = vpop.f32.mrb[0].mxu0
  %v204 = vadd.f32 %v52, %v203
  %v205 = vpop.f32.mrb[0].mxu0
  %206 = vmatprep.mubr.bf16.mxu0 0
  %207 = vmatmul.mubr.bf16.gmra.mrb[0].mxu0 %v89
  %v208 = vpop.f32.mrb[0].mxu0
  %v209 = vadd.f32 %v52, %v208
  %v210 = vpop.f32.mrb[0].mxu0
  %v211 = vpop.f32.mrb[0].mxu0
  %v212 = vadd.f32 %v52, %v211
  %v213 = vpop.f32.mrb[0].mxu0
  %214 = vmatprep.mubr.bf16.mxu0 0
  %215 = vmatmul.mubr.bf16.gmra.mrb[0].mxu0 %v90
  %v216 = vpop.f32.mrb[0].mxu0
  %v217 = vadd.f32 %v52, %v216
  %v218 = vpop.f32.mrb[0].mxu0
  %v219 = vpop.f32.mrb[0].mxu0
  %v220 = vadd.f32 %v52, %v219
  %v221 = vpop.f32.mrb[0].mxu0
  %222 = vmatprep.mubr.bf16.mxu0 0
  %223 = vmatmul.mubr.bf16.gmra.mrb[0].mxu0 %v91
  %v224 = vpop.f32.mrb[0].mxu0
  %v225 = vadd.f32 %v52, %v224
  %v226 = vpop.f32.mrb[0].mxu0
  %v227 = vpop.f32.mrb[0].mxu0
  %v228 = vadd.f32 %v52, %v227
  %v229 = vpop.f32.mrb[0].mxu0
  %230 = vmatprep.mubr.bf16.mxu0 0
  %231 = vmatmul.mubr.bf16.gmra.mrb[0].mxu0 %v92
  %v232 = vpop.f32.mrb[0].mxu0
  %v233 = vadd.f32 %v52, %v232
  %v234 = vpop.f32.mrb[0].mxu0
  %v235 = vpop.f32.mrb[0].mxu0
  %v236 = vadd.f32 %v52, %v235
  %v237 = vpop.f32.mrb[0].mxu0
  %238 = vmatprep.mubr.bf16.mxu0 0
  %239 = vmatmul.mubr.bf16.gmra.mrb[0].mxu0 %v93
  %v240 = vpop.f32.mrb[0].mxu0
  %v241 = vadd.f32 %v52, %v240
  %v242 = vpop.f32.mrb[0].mxu0
  %v243 = vpop.f32.mrb[0].mxu0
  %v244 = vadd.f32 %v52, %v243
  %v245 = vpop.f32.mrb[0].mxu0
  %246 = vdwg.mxu0
  %v247 = vmax.f32 %v185, 0.0
  %v248 = vmax.f32 %v188, 0.0
  %v249 = vmax.f32 %v193, 0.0
  %v250 = vmax.f32 %v196, 0.0
  %v251 = vmax.f32 %v201, 0.0
  %v252 = vmax.f32 %v204, 0.0
  %v253 = vmax.f32 %v209, 0.0
  %v254 = vmax.f32 %v212, 0.0
  %v255 = vmax.f32 %v217, 0.0
  %v256 = vmax.f32 %v220, 0.0
  %v257 = vmax.f32 %v225, 0.0
  %v258 = vmax.f32 %v228, 0.0
  %v259 = vmax.f32 %v233, 0.0
  %v260 = vmax.f32 %v236, 0.0
  %v261 = vmax.f32 %v241, 0.0
  %v262 = vmax.f32 %v244, 0.0
  %v263 = vpack.c.bf16 %v248, %v247
  %v264 = vpack.c.bf16 %v250, %v249
  %v265 = vpack.c.bf16 %v252, %v251
  %v266 = vpack.c.bf16 %v254, %v253
  %v267 = vpack.c.bf16 %v256, %v255
  %v268 = vpack.c.bf16 %v258, %v257
  %v269 = vpack.c.bf16 %v260, %v259
  %v270 = vpack.c.bf16 %v262, %v261
  %v279 = vunpack.c.l.b16 %v263
  %v280 = vunpack.c.h.b16 %v263
  %v281 = vunpack.c.l.b16 %v264
  %v282 = vunpack.c.h.b16 %v264
  %v283 = vunpack.c.l.b16 %v265
  %v284 = vunpack.c.h.b16 %v265
  %v285 = vunpack.c.l.b16 %v266
  %v286 = vunpack.c.h.b16 %v266
  %v287 = vunpack.c.l.b16 %v267
  %v288 = vunpack.c.h.b16 %v267
  %v289 = vunpack.c.l.b16 %v268
  %v290 = vunpack.c.h.b16 %v268
  %v291 = vunpack.c.l.b16 %v269
  %v292 = vunpack.c.h.b16 %v269
  %v293 = vunpack.c.l.b16 %v270
  %v294 = vunpack.c.h.b16 %v270
  %v295 = vpack.c.b16 %v279, %v279
  %v296 = vpack.c.b16 %v280, %v280
  %v297 = vpack.c.b16 %v281, %v281
  %v298 = vpack.c.b16 %v282, %v282
  %v299 = vpack.c.b16 %v283, %v283
  %v300 = vpack.c.b16 %v284, %v284
  %v301 = vpack.c.b16 %v285, %v285
  %v302 = vpack.c.b16 %v286, %v286
  %v303 = vpack.c.b16 %v287, %v287
  %v304 = vpack.c.b16 %v288, %v288
  %v305 = vpack.c.b16 %v289, %v289
  %v306 = vpack.c.b16 %v290, %v290
  %v307 = vpack.c.b16 %v291, %v291
  %v308 = vpack.c.b16 %v292, %v292
  %v309 = vpack.c.b16 %v293, %v293
  %v310 = vpack.c.b16 %v294, %v294
  %327 = vst [vmem:[%s3] sm:$0xf] %v295
  %328 = vst [vmem:[%s3 + $0x4] sm:$0xf] %v296
  %329 = vst [vmem:[%s3 + $0x8] sm:$0xf] %v297
  %330 = vst [vmem:[%s3 + $0xc] sm:$0xf] %v298
  %331 = vst [vmem:[%s3 + $0x10] sm:$0xf] %v299
  %332 = vst [vmem:[%s3 + $0x14] sm:$0xf] %v300
  %333 = vst [vmem:[%s3 + $0x18] sm:$0xf] %v301
  %334 = vst [vmem:[%s3 + $0x1c] sm:$0xf] %v302
  %335 = vst [vmem:[%s3 + $0x20] sm:$0xf] %v303
  %336 = vst [vmem:[%s3 + $0x24] sm:$0xf] %v304
  %337 = vst [vmem:[%s3 + $0x28] sm:$0xf] %v305
  %338 = vst [vmem:[%s3 + $0x2c] sm:$0xf] %v306
  %339 = vst [vmem:[%s3 + $0x30] sm:$0xf] %v307
  %340 = vst [vmem:[%s3 + $0x34] sm:$0xf] %v308
  %341 = vst [vmem:[%s3 + $0x38] sm:$0xf] %v309
  %342 = vst [vmem:[%s3 + $0x3c] sm:$0xf] %v310
  // Predicated region
  $region14: #{basic_block_forward.2} parent=0 // pred_check
    _
  $region15: #{basic_block_forward.2} parent=0 // pred_check_branch
    %344 = sbr.rel (0) target = $region17
  $region16: #{basic_block_forward.2} parent=0 // pred_region
    _
  $region17: #{basic_block_forward.2} parent=0 // pred_fallthru
    _
  // Predicated region
  $region18: #{basic_block_forward.2} parent=0 // pred_check
    _
  $region19: #{basic_block_forward.2} parent=0 // pred_check_branch
    %346 = sbr.rel (0) target = $region21
  $region20: #{basic_block_forward.2} parent=0 // pred_region
    _
  $region21: #{basic_block_forward.2} parent=0 // pred_fallthru
    _

// kernel: basic_block_forward.3
$region0: #{basic_block_forward.3}
  #allocation0 [shape = 'u32[]', space=smem, size = 0x4, offset = 0x4, fixed_abs, tag = 'smem constant byte address 0x4 - core index']
  #allocation1 [shape = 'u32[144,128]{1,0:T(1,128)}', space=vmem, size = 0x12000, scoped, tag = 'internal scratch']
  %s0 = inlined_call_operand.vmem [shape: bf16[128,128], index: 0, kind: input, shape index: {}]
  %s1 = inlined_call_operand.vmem [shape: bf16[128,128], index: 1, kind: input, shape index: {}]
  %s2 = inlined_call_operand.vmem [shape: f32[1,128], index: 2, kind: input, shape index: {}]
  %s3 = inlined_call_operand.vmem [shape: f32[128,128], index: 3, kind: output, shape index: {}]
  %s4 = sld [smem:[#allocation0]]
  $region22: #{basic_block_forward.3} parent=0
    _
  %s6 = ssub.s32 1, %s4
  %s7 = scalar_select 0, %s6, %s4
  // Predicated region
  $region2: #{basic_block_forward.3} parent=0 // pred_check
    _
  $region3: #{basic_block_forward.3} parent=0 // pred_check_branch
    %9 = sbr.rel (0) target = $region5
  $region4: #{basic_block_forward.3} parent=0 // pred_region
    _
  $region5: #{basic_block_forward.3} parent=0 // pred_fallthru
    _
  // Predicated region
  $region6: #{basic_block_forward.3} parent=0 // pred_check
    _
  $region7: #{basic_block_forward.3} parent=0 // pred_check_branch
    %11 = sbr.rel (0) target = $region9
  $region8: #{basic_block_forward.3} parent=0 // pred_region
    _
  $region9: #{basic_block_forward.3} parent=0 // pred_fallthru
    _
  // Predicated region
  $region10: #{basic_block_forward.3} parent=0 // pred_check
    _
  $region11: #{basic_block_forward.3} parent=0 // pred_check_branch
    %13 = sbr.rel (0) target = $region13
  $region12: #{basic_block_forward.3} parent=0 // pred_region
    _
  $region13: #{basic_block_forward.3} parent=0 // pred_fallthru
    _
  %v15 = vld [vmem:[%s0] sm:$0xf]
  %v16 = vld [vmem:[%s0 + $0x4] sm:$0xf]
  %v17 = vld [vmem:[%s0 + $0x8] sm:$0xf]
  %v18 = vld [vmem:[%s0 + $0xc] sm:$0xf]
  %v19 = vld [vmem:[%s0 + $0x10] sm:$0xf]
  %v20 = vld [vmem:[%s0 + $0x14] sm:$0xf]
  %v21 = vld [vmem:[%s0 + $0x18] sm:$0xf]
  %v22 = vld [vmem:[%s0 + $0x1c] sm:$0xf]
  %v23 = vld [vmem:[%s0 + $0x20] sm:$0xf]
  %v24 = vld [vmem:[%s0 + $0x24] sm:$0xf]
  %v25 = vld [vmem:[%s0 + $0x28] sm:$0xf]
  %v26 = vld [vmem:[%s0 + $0x2c] sm:$0xf]
  %v27 = vld [vmem:[%s0 + $0x30] sm:$0xf]
  %v28 = vld [vmem:[%s0 + $0x34] sm:$0xf]
  %v29 = vld [vmem:[%s0 + $0x38] sm:$0xf]
  %v30 = vld [vmem:[%s0 + $0x3c] sm:$0xf]
  %v31 = vld [vmem:[%s1] sm:$0xf]
  %v32 = vld [vmem:[%s1 + $0x4] sm:$0xf]
  %v33 = vld [vmem:[%s1 + $0x8] sm:$0xf]
  %v34 = vld [vmem:[%s1 + $0xc] sm:$0xf]
  %v35 = vld [vmem:[%s1 + $0x10] sm:$0xf]
  %v36 = vld [vmem:[%s1 + $0x14] sm:$0xf]
  %v37 = vld [vmem:[%s1 + $0x18] sm:$0xf]
  %v38 = vld [vmem:[%s1 + $0x1c] sm:$0xf]
  %v39 = vld [vmem:[%s1 + $0x20] sm:$0xf]
  %v40 = vld [vmem:[%s1 + $0x24] sm:$0xf]
  %v41 = vld [vmem:[%s1 + $0x28] sm:$0xf]
  %v42 = vld [vmem:[%s1 + $0x2c] sm:$0xf]
  %v43 = vld [vmem:[%s1 + $0x30] sm:$0xf]
  %v44 = vld [vmem:[%s1 + $0x34] sm:$0xf]
  %v45 = vld [vmem:[%s1 + $0x38] sm:$0xf]
  %v46 = vld [vmem:[%s1 + $0x3c] sm:$0xf]
  %v47 = vld [vmem:[%s2] sm:$0x1]
  %v49 = vlaneseq
  %v50 = vshrl.u32 %v49, 7
  %v51 = vsub.s32 0, %v50
  %v52 = vrot.slane %v47, %v51
  %v70 = vunpack.c.l.b16 %v15
  %v71 = vunpack.c.l.b16 %v16
  %v72 = vunpack.c.l.b16 %v17
  %v73 = vunpack.c.l.b16 %v18
  %v74 = vunpack.c.l.b16 %v19
  %v75 = vunpack.c.l.b16 %v20
  %v76 = vunpack.c.l.b16 %v21
  %v77 = vunpack.c.l.b16 %v22
  %v78 = vunpack.c.l.b16 %v23
  %v79 = vunpack.c.l.b16 %v24
  %v80 = vunpack.c.l.b16 %v25
  %v81 = vunpack.c.l.b16 %v26
  %v82 = vunpack.c.l.b16 %v27
  %v83 = vunpack.c.l.b16 %v28
  %v84 = vunpack.c.l.b16 %v29
  %v85 = vunpack.c.l.b16 %v30
  %v86 = vpack.c.b16 %v71, %v70
  %v87 = vpack.c.b16 %v73, %v72
  %v88 = vpack.c.b16 %v75, %v74
  %v89 = vpack.c.b16 %v77, %v76
  %v90 = vpack.c.b16 %v79, %v78
  %v91 = vpack.c.b16 %v81, %v80
  %v92 = vpack.c.b16 %v83, %v82
  %v93 = vpack.c.b16 %v85, %v84
  %v118 = vunpack.c.l.b16 %v31
  %v119 = vunpack.c.l.b16 %v32
  %v120 = vunpack.c.l.b16 %v33
  %v121 = vunpack.c.l.b16 %v34
  %v122 = vunpack.c.l.b16 %v35
  %v123 = vunpack.c.l.b16 %v36
  %v124 = vunpack.c.l.b16 %v37
  %v125 = vunpack.c.l.b16 %v38
  %v126 = vunpack.c.l.b16 %v39
  %v127 = vunpack.c.l.b16 %v40
  %v128 = vunpack.c.l.b16 %v41
  %v129 = vunpack.c.l.b16 %v42
  %v130 = vunpack.c.l.b16 %v43
  %v131 = vunpack.c.l.b16 %v44
  %v132 = vunpack.c.l.b16 %v45
  %v133 = vunpack.c.l.b16 %v46
  %v134 = vpack.c.b16 %v119, %v118
  %v135 = vpack.c.b16 %v121, %v120
  %v136 = vpack.c.b16 %v123, %v122
  %v137 = vpack.c.b16 %v125, %v124
  %v138 = vpack.c.b16 %v127, %v126
  %v139 = vpack.c.b16 %v129, %v128
  %v140 = vpack.c.b16 %v131, %v130
  %v141 = vpack.c.b16 %v133, %v132
  %150 = vmatprep.subr.bf16.mxu0 0
  %151 = vmatpush1.bf16.msra.mxu0 %v134
  %152 = vmatprep.subr.bf16.mxu0 0
  %153 = vmatpush1.bf16.msra.mxu0 %v135
  %154 = vmatprep.subr.bf16.mxu0 0
  %155 = vmatpush1.bf16.msra.mxu0 %v136
  %156 = vmatprep.subr.bf16.mxu0 0
  %157 = vmatpush1.bf16.msra.mxu0 %v137
  %158 = vmatprep.subr.bf16.mxu0 0
  %159 = vmatpush1.bf16.msra.mxu0 %v138
  %160 = vmatprep.subr.bf16.mxu0 0
  %161 = vmatpush1.bf16.msra.mxu0 %v139
  %162 = vmatprep.subr.bf16.mxu0 0
  %163 = vmatpush1.bf16.msra.mxu0 %v140
  %164 = vmatprep.subr.bf16.mxu0 0
  %165 = vmatpush1.bf16.msra.mxu0 %v141
  %166 = vmatprep.subr.bf16.mxu0 0
  %167 = vmatpush1.bf16.msra.mxu0 0
  %168 = vmatprep.subr.bf16.mxu0 0
  %169 = vmatpush1.bf16.msra.mxu0 0
  %170 = vmatprep.subr.bf16.mxu0 0
  %171 = vmatpush1.bf16.msra.mxu0 0
  %172 = vmatprep.subr.bf16.mxu0 0
  %173 = vmatpush1.bf16.msra.mxu0 0
  %174 = vmatprep.subr.bf16.mxu0 0
  %175 = vmatpush1.bf16.msra.mxu0 0
  %176 = vmatprep.subr.bf16.mxu0 0
  %177 = vmatpush1.bf16.msra.mxu0 0
  %178 = vmatprep.subr.bf16.mxu0 0
  %179 = vmatpush1.bf16.msra.mxu0 0
  %180 = vmatprep.subr.bf16.mxu0 0
  %181 = vmatpush1.bf16.msra.mxu0 0
  %182 = vmatprep.mubr.bf16.mxu0 0
  %183 = vmatmul.mubr.bf16.gmra.mrb[0].mxu0 %v86
  %v184 = vpop.f32.mrb[0].mxu0
  %v185 = vadd.f32 %v52, %v184
  %v186 = vpop.f32.mrb[0].mxu0
  %v187 = vpop.f32.mrb[0].mxu0
  %v188 = vadd.f32 %v52, %v187
  %v189 = vpop.f32.mrb[0].mxu0
  %190 = vmatprep.mubr.bf16.mxu0 0
  %191 = vmatmul.mubr.bf16.gmra.mrb[0].mxu0 %v87
  %v192 = vpop.f32.mrb[0].mxu0
  %v193 = vadd.f32 %v52, %v192
  %v194 = vpop.f32.mrb[0].mxu0
  %v195 = vpop.f32.mrb[0].mxu0
  %v196 = vadd.f32 %v52, %v195
  %v197 = vpop.f32.mrb[0].mxu0
  %198 = vmatprep.mubr.bf16.mxu0 0
  %199 = vmatmul.mubr.bf16.gmra.mrb[0].mxu0 %v88
  %v200 = vpop.f32.mrb[0].mxu0
  %v201 = vadd.f32 %v52, %v200
  %v202 = vpop.f32.mrb[0].mxu0
  %v203 = vpop.f32.mrb[0].mxu0
  %v204 = vadd.f32 %v52, %v203
  %v205 = vpop.f32.mrb[0].mxu0
  %206 = vmatprep.mubr.bf16.mxu0 0
  %207 = vmatmul.mubr.bf16.gmra.mrb[0].mxu0 %v89
  %v208 = vpop.f32.mrb[0].mxu0
  %v209 = vadd.f32 %v52, %v208
  %v210 = vpop.f32.mrb[0].mxu0
  %v211 = vpop.f32.mrb[0].mxu0
  %v212 = vadd.f32 %v52, %v211
  %v213 = vpop.f32.mrb[0].mxu0
  %214 = vmatprep.mubr.bf16.mxu0 0
  %215 = vmatmul.mubr.bf16.gmra.mrb[0].mxu0 %v90
  %v216 = vpop.f32.mrb[0].mxu0
  %v217 = vadd.f32 %v52, %v216
  %v218 = vpop.f32.mrb[0].mxu0
  %v219 = vpop.f32.mrb[0].mxu0
  %v220 = vadd.f32 %v52, %v219
  %v221 = vpop.f32.mrb[0].mxu0
  %222 = vmatprep.mubr.bf16.mxu0 0
  %223 = vmatmul.mubr.bf16.gmra.mrb[0].mxu0 %v91
  %v224 = vpop.f32.mrb[0].mxu0
  %v225 = vadd.f32 %v52, %v224
  %v226 = vpop.f32.mrb[0].mxu0
  %v227 = vpop.f32.mrb[0].mxu0
  %v228 = vadd.f32 %v52, %v227
  %v229 = vpop.f32.mrb[0].mxu0
  %230 = vmatprep.mubr.bf16.mxu0 0
  %231 = vmatmul.mubr.bf16.gmra.mrb[0].mxu0 %v92
  %v232 = vpop.f32.mrb[0].mxu0
  %v233 = vadd.f32 %v52, %v232
  %v234 = vpop.f32.mrb[0].mxu0
  %v235 = vpop.f32.mrb[0].mxu0
  %v236 = vadd.f32 %v52, %v235
  %v237 = vpop.f32.mrb[0].mxu0
  %238 = vmatprep.mubr.bf16.mxu0 0
  %239 = vmatmul.mubr.bf16.gmra.mrb[0].mxu0 %v93
  %v240 = vpop.f32.mrb[0].mxu0
  %v241 = vadd.f32 %v52, %v240
  %v242 = vpop.f32.mrb[0].mxu0
  %v243 = vpop.f32.mrb[0].mxu0
  %v244 = vadd.f32 %v52, %v243
  %v245 = vpop.f32.mrb[0].mxu0
  %246 = vdwg.mxu0
  %v247 = vmax.f32 %v185, 0.0
  %v248 = vmax.f32 %v188, 0.0
  %v249 = vmax.f32 %v193, 0.0
  %v250 = vmax.f32 %v196, 0.0
  %v251 = vmax.f32 %v201, 0.0
  %v252 = vmax.f32 %v204, 0.0
  %v253 = vmax.f32 %v209, 0.0
  %v254 = vmax.f32 %v212, 0.0
  %v255 = vmax.f32 %v217, 0.0
  %v256 = vmax.f32 %v220, 0.0
  %v257 = vmax.f32 %v225, 0.0
  %v258 = vmax.f32 %v228, 0.0
  %v259 = vmax.f32 %v233, 0.0
  %v260 = vmax.f32 %v236, 0.0
  %v261 = vmax.f32 %v241, 0.0
  %v262 = vmax.f32 %v244, 0.0
  %263 = vst [vmem:[%s3] sm:$0xff] %v247
  %264 = vst [vmem:[%s3 + $0x8] sm:$0xff] %v248
  %265 = vst [vmem:[%s3 + $0x10] sm:$0xff] %v249
  %266 = vst [vmem:[%s3 + $0x18] sm:$0xff] %v250
  %267 = vst [vmem:[%s3 + $0x20] sm:$0xff] %v251
  %268 = vst [vmem:[%s3 + $0x28] sm:$0xff] %v252
  %269 = vst [vmem:[%s3 + $0x30] sm:$0xff] %v253
  %270 = vst [vmem:[%s3 + $0x38] sm:$0xff] %v254
  %271 = vst [vmem:[%s3 + $0x40] sm:$0xff] %v255
  %272 = vst [vmem:[%s3 + $0x48] sm:$0xff] %v256
  %273 = vst [vmem:[%s3 + $0x50] sm:$0xff] %v257
  %274 = vst [vmem:[%s3 + $0x58] sm:$0xff] %v258
  %275 = vst [vmem:[%s3 + $0x60] sm:$0xff] %v259
  %276 = vst [vmem:[%s3 + $0x68] sm:$0xff] %v260
  %277 = vst [vmem:[%s3 + $0x70] sm:$0xff] %v261
  %278 = vst [vmem:[%s3 + $0x78] sm:$0xff] %v262
  // Predicated region
  $region14: #{basic_block_forward.3} parent=0 // pred_check
    _
  $region15: #{basic_block_forward.3} parent=0 // pred_check_branch
    %280 = sbr.rel (0) target = $region17
  $region16: #{basic_block_forward.3} parent=0 // pred_region
    _
  $region17: #{basic_block_forward.3} parent=0 // pred_fallthru
    _
  // Predicated region
  $region18: #{basic_block_forward.3} parent=0 // pred_check
    _
  $region19: #{basic_block_forward.3} parent=0 // pred_check_branch
    %282 = sbr.rel (0) target = $region21
  $region20: #{basic_block_forward.3} parent=0 // pred_region
    _
  $region21: #{basic_block_forward.3} parent=0 // pred_fallthru
    _

</llo_original>
